<compile_context>
chip_gen: v6e
topology: v6e:2x2x1
jax: 0.10.0
libtpu: 0.0.40
codegen_flags: <defaults>
</compile_context>

<pallas_src>
import jax
import jax.numpy as jnp
from jax.experimental import pallas as pl
from jax.experimental.pallas import tpu as pltpu

IN_F = 1       # MLP input size
HID = 10       # units[0]
OUT_F = 1      # units[1]
LANES = 128    # vreg lane width — batch maps onto lanes


def mlp_kernel(params_ref, x_ref, z_ref, u_ref):
    """params_ref: SMEM f32[31] = [w1(10) | b1(10) | w2(10) | b2(1)].
    x_ref/z_ref/u_ref: (block_rows, 128) lane-dense batch slabs."""
    x = x_ref[...]                                   # (br, 128) f32

    b2 = params_ref[3 * HID]
    acc = jnp.zeros_like(x) + b2                     # start from output bias

    # Fully unrolled over the 10 hidden units: pure VPU + EUP work, no MXU.
    for j in range(HID):
        w1j = params_ref[j]
        b1j = params_ref[HID + j]
        w2j = params_ref[2 * HID + j]
        h = x * w1j + b1j
        # PyTorch Softplus semantics (beta=1, threshold=20): identity above 20.
        # The min() keeps the dead exp branch finite (numerical hygiene only;
        # cost is negligible next to the EUP exp/log1p pair).
        sp = jnp.where(h > 20.0, h, jnp.log1p(jnp.exp(jnp.minimum(h, 20.0))))
        acc = acc + sp * w2j

    z_ref[...] = acc                                 # MLP forward output z = f(x)
    u_ref[...] = x * x * acc                         # u = x * x * f(x)


def mlp_displacement(x, w1, b1, w2, b2, *, block_rows=1024):
    """x: (N, 1) (or (N,)) float32.  w1: (1,10), b1: (10,), w2: (10,1), b2: (1,).
    Returns (z, u) with the same leading shape as x."""
    x = jnp.asarray(x, jnp.float32)
    lead_shape = x.shape
    xf = x.reshape(-1)
    N = xf.shape[0]

    # Lane-dense layout: batch -> (rows, 128).  Pad flat N to a whole number
    # of (block_rows x 128) tiles (remainder handling for ragged N).
    rows = (N + LANES - 1) // LANES
    br = max(8, min(block_rows, rows))
    br = ((br + 7) // 8) * 8                         # sublane multiple of 8
    rows_p = ((rows + br - 1) // br) * br
    n_pad = rows_p * LANES
    x2 = jnp.pad(xf, (0, n_pad - N)).reshape(rows_p, LANES)

    # All 31 parameters as scalars for SMEM.
    params = jnp.concatenate([
        jnp.asarray(w1, jnp.float32).reshape(-1),    # 10
        jnp.asarray(b1, jnp.float32).reshape(-1),    # 10
        jnp.asarray(w2, jnp.float32).reshape(-1),    # 10
        jnp.asarray(b2, jnp.float32).reshape(-1),    # 1
    ])

    grid = (rows_p // br,)

    z2, u2 = pl.pallas_call(
        mlp_kernel,
        grid=grid,
        in_specs=[
            pl.BlockSpec(memory_space=pltpu.MemorySpace.SMEM),   # params (whole, SMEM)
            pl.BlockSpec((br, LANES), lambda i: (i, 0)),         # x slab
        ],
        out_specs=(
            pl.BlockSpec((br, LANES), lambda i: (i, 0)),         # z slab
            pl.BlockSpec((br, LANES), lambda i: (i, 0)),         # u slab
        ),
        out_shape=(
            jax.ShapeDtypeStruct((rows_p, LANES), jnp.float32),
            jax.ShapeDtypeStruct((rows_p, LANES), jnp.float32),
        ),
        compiler_params=pltpu.CompilerParams(
            dimension_semantics=("parallel",)),
    )(params, x2)

    z = z2.reshape(-1)[:N].reshape(lead_shape)
    u = u2.reshape(-1)[:N].reshape(lead_shape)
    return z, u


def _reference(x, w1, b1, w2, b2):
    h = x @ w1 + b1
    h = jnp.where(h > 20.0, h, jnp.log1p(jnp.exp(jnp.minimum(h, 20.0))))
    z = h @ w2 + b2
    return z, x * x * z


if __name__ == "__main__":
    key = jax.random.PRNGKey(0)
    kx, k1, k2, k3, k4 = jax.random.split(key, 5)

    # Ragged N (not a multiple of 128) to exercise tail padding; small demo
    # tile so the grid has >= 2 steps.  Real use keeps block_rows=1024.
    N = 3000
    x = jax.random.uniform(kx, (N, IN_F), jnp.float32)   # beam coordinate in [0, 1)

    # Deterministic init mimicking nn.Linear default (uniform +/- 1/sqrt(fan_in))
    b = 1.0 / jnp.sqrt(jnp.float32(IN_F))
    w1 = jax.random.uniform(k1, (IN_F, HID), jnp.float32, -b, b)
    b1 = jax.random.uniform(k2, (HID,), jnp.float32, -b, b)
    b = 1.0 / jnp.sqrt(jnp.float32(HID))
    w2 = jax.random.uniform(k3, (HID, OUT_F), jnp.float32, -b, b)
    b2 = jax.random.uniform(k4, (OUT_F,), jnp.float32, -b, b)

    z, u = mlp_displacement(x, w1, b1, w2, b2, block_rows=8)
    jax.block_until_ready((z, u))

    z_ref, u_ref = _reference(x, w1, b1, w2, b2)
    assert jnp.allclose(z, z_ref, atol=1e-5), "z mismatch"
    assert jnp.allclose(u, u_ref, atol=1e-5), "u mismatch"

    print("KERNEL_OK")
</pallas_src>

<mosaic_0001>
module attributes {stable_mosaic.version = 11 : i64} {
  func.func @mlp_kernel(%arg0: i32, %arg1: memref<31xf32, #tpu.memory_space<smem>>, %arg2: memref<8x128xf32, #tpu.memory_space<vmem>>, %arg3: memref<8x128xf32, #tpu.memory_space<vmem>>, %arg4: memref<8x128xf32, #tpu.memory_space<vmem>>) attributes {dimension_semantics = [#tpu.dimension_semantics<parallel>], iteration_bounds = array<i64: 3>, scalar_prefetch = 0 : i64, scratch_operands = 0 : i64, tpu.core_type = #tpu.core_type<tc>, window_params = [{transform_indices = @transform_0, window_bounds = array<i64: 31>}, {transform_indices = @transform_1, window_bounds = array<i64: 8, 128>}, {transform_indices = @transform_2, window_bounds = array<i64: 8, 128>}, {transform_indices = @transform_3, window_bounds = array<i64: 8, 128>}]} {
    %c0 = arith.constant 0 : index
    %c0_0 = arith.constant 0 : index
    %0 = vector.load %arg2[%c0, %c0_0] : memref<8x128xf32, #tpu.memory_space<vmem>>, vector<8x128xf32>
    %c30 = arith.constant 30 : index
    %1 = memref.load %arg1[%c30] : memref<31xf32, #tpu.memory_space<smem>>
    %cst = arith.constant 0.000000e+00 : f32
    %2 = vector.broadcast %cst : f32 to vector<8x128xf32>
    %3 = vector.broadcast %1 : f32 to vector<8x128xf32>
    %4 = arith.addf %2, %3 : vector<8x128xf32>
    %c0_1 = arith.constant 0 : index
    %5 = memref.load %arg1[%c0_1] : memref<31xf32, #tpu.memory_space<smem>>
    %c10 = arith.constant 10 : index
    %6 = memref.load %arg1[%c10] : memref<31xf32, #tpu.memory_space<smem>>
    %c20 = arith.constant 20 : index
    %7 = memref.load %arg1[%c20] : memref<31xf32, #tpu.memory_space<smem>>
    %8 = vector.broadcast %5 : f32 to vector<8x128xf32>
    %9 = arith.mulf %0, %8 : vector<8x128xf32>
    %10 = vector.broadcast %6 : f32 to vector<8x128xf32>
    %11 = arith.addf %9, %10 : vector<8x128xf32>
    %cst_2 = arith.constant 2.000000e+01 : f32
    %12 = vector.broadcast %cst_2 : f32 to vector<8x128xf32>
    %13 = arith.cmpf ogt, %11, %12 : vector<8x128xf32>
    %cst_3 = arith.constant 2.000000e+01 : f32
    %14 = vector.broadcast %cst_3 : f32 to vector<8x128xf32>
    %15 = arith.minimumf %11, %14 : vector<8x128xf32>
    %16 = math.exp %15 : vector<8x128xf32>
    %17 = math.log1p %16 : vector<8x128xf32>
    %18 = arith.select %13, %11, %17 : vector<8x128xi1>, vector<8x128xf32>
    %19 = vector.broadcast %7 : f32 to vector<8x128xf32>
    %20 = arith.mulf %18, %19 : vector<8x128xf32>
    %21 = arith.addf %4, %20 : vector<8x128xf32>
    %c1 = arith.constant 1 : index
    %22 = memref.load %arg1[%c1] : memref<31xf32, #tpu.memory_space<smem>>
    %c11 = arith.constant 11 : index
    %23 = memref.load %arg1[%c11] : memref<31xf32, #tpu.memory_space<smem>>
    %c21 = arith.constant 21 : index
    %24 = memref.load %arg1[%c21] : memref<31xf32, #tpu.memory_space<smem>>
    %25 = vector.broadcast %22 : f32 to vector<8x128xf32>
    %26 = arith.mulf %0, %25 : vector<8x128xf32>
    %27 = vector.broadcast %23 : f32 to vector<8x128xf32>
    %28 = arith.addf %26, %27 : vector<8x128xf32>
    %cst_4 = arith.constant 2.000000e+01 : f32
    %29 = vector.broadcast %cst_4 : f32 to vector<8x128xf32>
    %30 = arith.cmpf ogt, %28, %29 : vector<8x128xf32>
    %cst_5 = arith.constant 2.000000e+01 : f32
    %31 = vector.broadcast %cst_5 : f32 to vector<8x128xf32>
    %32 = arith.minimumf %28, %31 : vector<8x128xf32>
    %33 = math.exp %32 : vector<8x128xf32>
    %34 = math.log1p %33 : vector<8x128xf32>
    %35 = arith.select %30, %28, %34 : vector<8x128xi1>, vector<8x128xf32>
    %36 = vector.broadcast %24 : f32 to vector<8x128xf32>
    %37 = arith.mulf %35, %36 : vector<8x128xf32>
    %38 = arith.addf %21, %37 : vector<8x128xf32>
    %c2 = arith.constant 2 : index
    %39 = memref.load %arg1[%c2] : memref<31xf32, #tpu.memory_space<smem>>
    %c12 = arith.constant 12 : index
    %40 = memref.load %arg1[%c12] : memref<31xf32, #tpu.memory_space<smem>>
    %c22 = arith.constant 22 : index
    %41 = memref.load %arg1[%c22] : memref<31xf32, #tpu.memory_space<smem>>
    %42 = vector.broadcast %39 : f32 to vector<8x128xf32>
    %43 = arith.mulf %0, %42 : vector<8x128xf32>
    %44 = vector.broadcast %40 : f32 to vector<8x128xf32>
    %45 = arith.addf %43, %44 : vector<8x128xf32>
    %cst_6 = arith.constant 2.000000e+01 : f32
    %46 = vector.broadcast %cst_6 : f32 to vector<8x128xf32>
    %47 = arith.cmpf ogt, %45, %46 : vector<8x128xf32>
    %cst_7 = arith.constant 2.000000e+01 : f32
    %48 = vector.broadcast %cst_7 : f32 to vector<8x128xf32>
    %49 = arith.minimumf %45, %48 : vector<8x128xf32>
    %50 = math.exp %49 : vector<8x128xf32>
    %51 = math.log1p %50 : vector<8x128xf32>
    %52 = arith.select %47, %45, %51 : vector<8x128xi1>, vector<8x128xf32>
    %53 = vector.broadcast %41 : f32 to vector<8x128xf32>
    %54 = arith.mulf %52, %53 : vector<8x128xf32>
    %55 = arith.addf %38, %54 : vector<8x128xf32>
    %c3 = arith.constant 3 : index
    %56 = memref.load %arg1[%c3] : memref<31xf32, #tpu.memory_space<smem>>
    %c13 = arith.constant 13 : index
    %57 = memref.load %arg1[%c13] : memref<31xf32, #tpu.memory_space<smem>>
    %c23 = arith.constant 23 : index
    %58 = memref.load %arg1[%c23] : memref<31xf32, #tpu.memory_space<smem>>
    %59 = vector.broadcast %56 : f32 to vector<8x128xf32>
    %60 = arith.mulf %0, %59 : vector<8x128xf32>
    %61 = vector.broadcast %57 : f32 to vector<8x128xf32>
    %62 = arith.addf %60, %61 : vector<8x128xf32>
    %cst_8 = arith.constant 2.000000e+01 : f32
    %63 = vector.broadcast %cst_8 : f32 to vector<8x128xf32>
    %64 = arith.cmpf ogt, %62, %63 : vector<8x128xf32>
    %cst_9 = arith.constant 2.000000e+01 : f32
    %65 = vector.broadcast %cst_9 : f32 to vector<8x128xf32>
    %66 = arith.minimumf %62, %65 : vector<8x128xf32>
    %67 = math.exp %66 : vector<8x128xf32>
    %68 = math.log1p %67 : vector<8x128xf32>
    %69 = arith.select %64, %62, %68 : vector<8x128xi1>, vector<8x128xf32>
    %70 = vector.broadcast %58 : f32 to vector<8x128xf32>
    %71 = arith.mulf %69, %70 : vector<8x128xf32>
    %72 = arith.addf %55, %71 : vector<8x128xf32>
    %c4 = arith.constant 4 : index
    %73 = memref.load %arg1[%c4] : memref<31xf32, #tpu.memory_space<smem>>
    %c14 = arith.constant 14 : index
    %74 = memref.load %arg1[%c14] : memref<31xf32, #tpu.memory_space<smem>>
    %c24 = arith.constant 24 : index
    %75 = memref.load %arg1[%c24] : memref<31xf32, #tpu.memory_space<smem>>
    %76 = vector.broadcast %73 : f32 to vector<8x128xf32>
    %77 = arith.mulf %0, %76 : vector<8x128xf32>
    %78 = vector.broadcast %74 : f32 to vector<8x128xf32>
    %79 = arith.addf %77, %78 : vector<8x128xf32>
    %cst_10 = arith.constant 2.000000e+01 : f32
    %80 = vector.broadcast %cst_10 : f32 to vector<8x128xf32>
    %81 = arith.cmpf ogt, %79, %80 : vector<8x128xf32>
    %cst_11 = arith.constant 2.000000e+01 : f32
    %82 = vector.broadcast %cst_11 : f32 to vector<8x128xf32>
    %83 = arith.minimumf %79, %82 : vector<8x128xf32>
    %84 = math.exp %83 : vector<8x128xf32>
    %85 = math.log1p %84 : vector<8x128xf32>
    %86 = arith.select %81, %79, %85 : vector<8x128xi1>, vector<8x128xf32>
    %87 = vector.broadcast %75 : f32 to vector<8x128xf32>
    %88 = arith.mulf %86, %87 : vector<8x128xf32>
    %89 = arith.addf %72, %88 : vector<8x128xf32>
    %c5 = arith.constant 5 : index
    %90 = memref.load %arg1[%c5] : memref<31xf32, #tpu.memory_space<smem>>
    %c15 = arith.constant 15 : index
    %91 = memref.load %arg1[%c15] : memref<31xf32, #tpu.memory_space<smem>>
    %c25 = arith.constant 25 : index
    %92 = memref.load %arg1[%c25] : memref<31xf32, #tpu.memory_space<smem>>
    %93 = vector.broadcast %90 : f32 to vector<8x128xf32>
    %94 = arith.mulf %0, %93 : vector<8x128xf32>
    %95 = vector.broadcast %91 : f32 to vector<8x128xf32>
    %96 = arith.addf %94, %95 : vector<8x128xf32>
    %cst_12 = arith.constant 2.000000e+01 : f32
    %97 = vector.broadcast %cst_12 : f32 to vector<8x128xf32>
    %98 = arith.cmpf ogt, %96, %97 : vector<8x128xf32>
    %cst_13 = arith.constant 2.000000e+01 : f32
    %99 = vector.broadcast %cst_13 : f32 to vector<8x128xf32>
    %100 = arith.minimumf %96, %99 : vector<8x128xf32>
    %101 = math.exp %100 : vector<8x128xf32>
    %102 = math.log1p %101 : vector<8x128xf32>
    %103 = arith.select %98, %96, %102 : vector<8x128xi1>, vector<8x128xf32>
    %104 = vector.broadcast %92 : f32 to vector<8x128xf32>
    %105 = arith.mulf %103, %104 : vector<8x128xf32>
    %106 = arith.addf %89, %105 : vector<8x128xf32>
    %c6 = arith.constant 6 : index
    %107 = memref.load %arg1[%c6] : memref<31xf32, #tpu.memory_space<smem>>
    %c16 = arith.constant 16 : index
    %108 = memref.load %arg1[%c16] : memref<31xf32, #tpu.memory_space<smem>>
    %c26 = arith.constant 26 : index
    %109 = memref.load %arg1[%c26] : memref<31xf32, #tpu.memory_space<smem>>
    %110 = vector.broadcast %107 : f32 to vector<8x128xf32>
    %111 = arith.mulf %0, %110 : vector<8x128xf32>
    %112 = vector.broadcast %108 : f32 to vector<8x128xf32>
    %113 = arith.addf %111, %112 : vector<8x128xf32>
    %cst_14 = arith.constant 2.000000e+01 : f32
    %114 = vector.broadcast %cst_14 : f32 to vector<8x128xf32>
    %115 = arith.cmpf ogt, %113, %114 : vector<8x128xf32>
    %cst_15 = arith.constant 2.000000e+01 : f32
    %116 = vector.broadcast %cst_15 : f32 to vector<8x128xf32>
    %117 = arith.minimumf %113, %116 : vector<8x128xf32>
    %118 = math.exp %117 : vector<8x128xf32>
    %119 = math.log1p %118 : vector<8x128xf32>
    %120 = arith.select %115, %113, %119 : vector<8x128xi1>, vector<8x128xf32>
    %121 = vector.broadcast %109 : f32 to vector<8x128xf32>
    %122 = arith.mulf %120, %121 : vector<8x128xf32>
    %123 = arith.addf %106, %122 : vector<8x128xf32>
    %c7 = arith.constant 7 : index
    %124 = memref.load %arg1[%c7] : memref<31xf32, #tpu.memory_space<smem>>
    %c17 = arith.constant 17 : index
    %125 = memref.load %arg1[%c17] : memref<31xf32, #tpu.memory_space<smem>>
    %c27 = arith.constant 27 : index
    %126 = memref.load %arg1[%c27] : memref<31xf32, #tpu.memory_space<smem>>
    %127 = vector.broadcast %124 : f32 to vector<8x128xf32>
    %128 = arith.mulf %0, %127 : vector<8x128xf32>
    %129 = vector.broadcast %125 : f32 to vector<8x128xf32>
    %130 = arith.addf %128, %129 : vector<8x128xf32>
    %cst_16 = arith.constant 2.000000e+01 : f32
    %131 = vector.broadcast %cst_16 : f32 to vector<8x128xf32>
    %132 = arith.cmpf ogt, %130, %131 : vector<8x128xf32>
    %cst_17 = arith.constant 2.000000e+01 : f32
    %133 = vector.broadcast %cst_17 : f32 to vector<8x128xf32>
    %134 = arith.minimumf %130, %133 : vector<8x128xf32>
    %135 = math.exp %134 : vector<8x128xf32>
    %136 = math.log1p %135 : vector<8x128xf32>
    %137 = arith.select %132, %130, %136 : vector<8x128xi1>, vector<8x128xf32>
    %138 = vector.broadcast %126 : f32 to vector<8x128xf32>
    %139 = arith.mulf %137, %138 : vector<8x128xf32>
    %140 = arith.addf %123, %139 : vector<8x128xf32>
    %c8 = arith.constant 8 : index
    %141 = memref.load %arg1[%c8] : memref<31xf32, #tpu.memory_space<smem>>
    %c18 = arith.constant 18 : index
    %142 = memref.load %arg1[%c18] : memref<31xf32, #tpu.memory_space<smem>>
    %c28 = arith.constant 28 : index
    %143 = memref.load %arg1[%c28] : memref<31xf32, #tpu.memory_space<smem>>
    %144 = vector.broadcast %141 : f32 to vector<8x128xf32>
    %145 = arith.mulf %0, %144 : vector<8x128xf32>
    %146 = vector.broadcast %142 : f32 to vector<8x128xf32>
    %147 = arith.addf %145, %146 : vector<8x128xf32>
    %cst_18 = arith.constant 2.000000e+01 : f32
    %148 = vector.broadcast %cst_18 : f32 to vector<8x128xf32>
    %149 = arith.cmpf ogt, %147, %148 : vector<8x128xf32>
    %cst_19 = arith.constant 2.000000e+01 : f32
    %150 = vector.broadcast %cst_19 : f32 to vector<8x128xf32>
    %151 = arith.minimumf %147, %150 : vector<8x128xf32>
    %152 = math.exp %151 : vector<8x128xf32>
    %153 = math.log1p %152 : vector<8x128xf32>
    %154 = arith.select %149, %147, %153 : vector<8x128xi1>, vector<8x128xf32>
    %155 = vector.broadcast %143 : f32 to vector<8x128xf32>
    %156 = arith.mulf %154, %155 : vector<8x128xf32>
    %157 = arith.addf %140, %156 : vector<8x128xf32>
    %c9 = arith.constant 9 : index
    %158 = memref.load %arg1[%c9] : memref<31xf32, #tpu.memory_space<smem>>
    %c19 = arith.constant 19 : index
    %159 = memref.load %arg1[%c19] : memref<31xf32, #tpu.memory_space<smem>>
    %c29 = arith.constant 29 : index
    %160 = memref.load %arg1[%c29] : memref<31xf32, #tpu.memory_space<smem>>
    %161 = vector.broadcast %158 : f32 to vector<8x128xf32>
    %162 = arith.mulf %0, %161 : vector<8x128xf32>
    %163 = vector.broadcast %159 : f32 to vector<8x128xf32>
    %164 = arith.addf %162, %163 : vector<8x128xf32>
    %cst_20 = arith.constant 2.000000e+01 : f32
    %165 = vector.broadcast %cst_20 : f32 to vector<8x128xf32>
    %166 = arith.cmpf ogt, %164, %165 : vector<8x128xf32>
    %cst_21 = arith.constant 2.000000e+01 : f32
    %167 = vector.broadcast %cst_21 : f32 to vector<8x128xf32>
    %168 = arith.minimumf %164, %167 : vector<8x128xf32>
    %169 = math.exp %168 : vector<8x128xf32>
    %170 = math.log1p %169 : vector<8x128xf32>
    %171 = arith.select %166, %164, %170 : vector<8x128xi1>, vector<8x128xf32>
    %172 = vector.broadcast %160 : f32 to vector<8x128xf32>
    %173 = arith.mulf %171, %172 : vector<8x128xf32>
    %174 = arith.addf %157, %173 : vector<8x128xf32>
    %c0_22 = arith.constant 0 : index
    %c0_23 = arith.constant 0 : index
    %175 = vector.load %arg3[%c0_22, %c0_23] : memref<8x128xf32, #tpu.memory_space<vmem>>, vector<8x128xf32>
    tpu.vector_store %arg3[%c0_22, %c0_23], %174 {strides = array<i32>} : memref<8x128xf32, #tpu.memory_space<vmem>>, vector<8x128xf32>,
    %176 = arith.mulf %0, %0 : vector<8x128xf32>
    %177 = arith.mulf %176, %174 : vector<8x128xf32>
    %c0_24 = arith.constant 0 : index
    %c0_25 = arith.constant 0 : index
    %178 = vector.load %arg4[%c0_24, %c0_25] : memref<8x128xf32, #tpu.memory_space<vmem>>, vector<8x128xf32>
    tpu.vector_store %arg4[%c0_24, %c0_25], %177 {strides = array<i32>} : memref<8x128xf32, #tpu.memory_space<vmem>>, vector<8x128xf32>,
    return
  }
  func.func @transform_0(%arg0: i32) -> i32 {
    %c0_i32 = arith.constant 0 : i32
    %c0_i32_0 = arith.constant 0 : i32
    return %c0_i32 : i32
  }
  func.func @transform_1(%arg0: i32) -> (i32, i32) {
    %c0_i32 = arith.constant 0 : i32
    %c0_i32_0 = arith.constant 0 : i32
    return %arg0, %c0_i32 : i32, i32
  }
  func.func @transform_2(%arg0: i32) -> (i32, i32) {
    %c0_i32 = arith.constant 0 : i32
    %c0_i32_0 = arith.constant 0 : i32
    return %arg0, %c0_i32 : i32, i32
  }
  func.func @transform_3(%arg0: i32) -> (i32, i32) {
    %c0_i32 = arith.constant 0 : i32
    %c0_i32_0 = arith.constant 0 : i32
    return %arg0, %c0_i32 : i32, i32
  }
}

</mosaic_0001>

<llo_original>
// kernel: tpu_custom_call.1
$region0: #{tpu_custom_call.1}
  #allocation0 [shape = 'u32[]', space=smem, size = 0x4, offset = 0x4, fixed_abs, tag = 'smem constant byte address 0x4 - core index']
  #allocation1 [shape = 'u32[144,128]{1,0:T(1,128)}', space=vmem, size = 0x12000, scoped, tag = 'internal scratch']
  %s0 = inlined_call_operand.hbm [shape: f32[31], index: 0, kind: input, shape index: {}]
  %s1 = inlined_call_operand.hbm [shape: f32[24,128], index: 1, kind: input, shape index: {}]
  %s2 = inlined_call_operand.hbm [shape: f32[24,128], index: 2, kind: output, shape index: {0}]
  %s3 = inlined_call_operand.hbm [shape: f32[24,128], index: 3, kind: output, shape index: {1}]
  %4 = xla_tuple %s2, %s3
  %s5 = sld [smem:[#allocation0]]
  $region57: #{tpu_custom_call.1} parent=0
    _
  %s7 = ssub.s32 1, %s5
  %s8 = scalar_select 0, %s7, %s5
  $region1: #{tpu_custom_call.1} parent=0
    #allocation2 [shape = 'u8[512]{0}', space=smem, size = 0x200, scoped, tag = 'input window, operand 0, single buffered']
    #allocation3 [shape = 's32[2]{0}', space=sflag, size = 0x8, scoped, tag = 'scoped memory for tpu_custom_call.1']
    #allocation4 [shape = 's32[2]{0}', space=sflag, size = 0x8, scoped, tag = 'scoped memory for tpu_custom_call.1']
    #allocation5 [shape = 's32[2]{0}', space=sflag, size = 0x8, scoped, tag = 'scoped memory for tpu_custom_call.1']
    #allocation6 [shape = 'u8[8192]{0}', space=vmem, size = 0x2000, scoped, tag = 'input window, operand 1']
    #allocation7 [shape = 'u8[8192]{0}', space=vmem, size = 0x2000, scoped, tag = 'output window, operand 0']
    #allocation8 [shape = 'u8[8192]{0}', space=vmem, size = 0x2000, scoped, tag = 'output window, operand 1']
    #allocation9 [shape = 's32[2]{0}', space=sflag, size = 0x8, scoped, tag = 'scoped memory for tpu_custom_call.1']
    %9 = vsyncpa [#allocation5], 0
    %10 = vsyncpa [#allocation3], 0
    %s11 = scalar_lea.sflag [#allocation3], 1
    %12 = vsyncpa %s11, 0
    %13 = vsyncpa [#allocation4], 0
    %s14 = scalar_lea.sflag [#allocation4], 1
    %15 = vsyncpa %s14, 0
    %16 = vsyncpa [#allocation9], 0
    %s17 = scalar_lea.sflag [#allocation9], 1
    %18 = vsyncpa %s17, 0
    loop: start=0, step=1, limit=5
    $region2: #{tpu_custom_call.1} parent=1 // loop_pre_header
      _
    $region3: #{tpu_custom_call.1} parent=1 // loop_header
      %s20 = sphi 0, %s24
      %p21 = scmp.ge.s32.totalorder %s20, 5
      %s28 = sphi 0, %s28
      %s30 = sphi 0, %s28
      %s31 = sphi 0, %s30
      %s45 = sphi 0, %s31
      %s51 = sphi 0, %s53
      %s54 = sphi 0, %s51
      %s55 = sphi 0, %s54
      %s71 = sphi 0, %s55
      %s77 = sphi 0, %s79
      %s80 = sphi 0, %s77
      %s81 = sphi 0, %s80
      %s97 = sphi 0, %s81
      %s103 = sphi 0, %s105
      %s106 = sphi 0, %s103
      %s107 = sphi 0, %s106
      %s123 = sphi 0, %s107
    $region4: #{tpu_custom_call.1} parent=1 // loop_header_branch
      %23 = sbr.rel (%p21) target = $region8
    $region5: #{tpu_custom_call.1} parent=1 // loop_body
      %s25 = ssub.s32 %s20, 1
      %s26 = ssub.s32 %s20, 2
      %s27 = sadd.s32 %s20, 1
      %s29 = sadd.s32 %s28, 1
      %p32 = scmp.eq.s32.totalorder %s20, 2
      %p33 = scmp.ne.s32.totalorder %s28, %s30
      %p34 = scmp.eq.s32.totalorder %s20, 0
      %p35 = por %p33, %p34
      %p36 = scmp.ne.s32.totalorder %s28, %s30
      %p37 = scmp.eq.s32.totalorder %s25, 2
      %p38 = por %p36, %p37
      %p39 = scmp.ne.s32.totalorder %s30, %s31
      %p40 = scmp.eq.s32.totalorder %s25, 0
      %p41 = por %p39, %p40
      %p42 = scmp.ne.s32.totalorder %s30, %s31
      %p43 = scmp.eq.s32.totalorder %s26, 2
      %p44 = por %p42, %p43
      %p46 = scmp.ne.s32.totalorder %s31, %s45
      %p47 = scmp.eq.s32.totalorder %s26, 0
      %p48 = por %p46, %p47
      %s49 = ssub.s32 %s20, %s27
      %p50 = scmp.eq.s32.totalorder %s49, 0
      %s52 = sadd.s32 %s51, 1
      %s53 = scalar_select %p50, %s51, %s52
      %p56 = pneg %p50
      %p57 = scmp.eq.s32.totalorder %s20, 2
      %p58 = por %p56, %p57
      %p59 = scmp.ne.s32.totalorder %s51, %s54
      %p60 = scmp.eq.s32.totalorder %s20, 0
      %p61 = por %p59, %p60
      %p62 = scmp.ne.s32.totalorder %s51, %s54
      %p63 = scmp.eq.s32.totalorder %s25, 2
      %p64 = por %p62, %p63
      %p65 = scmp.ne.s32.totalorder %s54, %s55
      %p66 = scmp.eq.s32.totalorder %s25, 0
      %p67 = por %p65, %p66
      %p68 = scmp.ne.s32.totalorder %s54, %s55
      %p69 = scmp.eq.s32.totalorder %s26, 2
      %p70 = por %p68, %p69
      %p72 = scmp.ne.s32.totalorder %s55, %s71
      %p73 = scmp.eq.s32.totalorder %s26, 0
      %p74 = por %p72, %p73
      %s75 = ssub.s32 %s20, %s27
      %p76 = scmp.eq.s32.totalorder %s75, 0
      %s78 = sadd.s32 %s77, 1
      %s79 = scalar_select %p76, %s77, %s78
      %p82 = pneg %p76
      %p83 = scmp.eq.s32.totalorder %s20, 2
      %p84 = por %p82, %p83
      %p85 = scmp.ne.s32.totalorder %s77, %s80
      %p86 = scmp.eq.s32.totalorder %s20, 0
      %p87 = por %p85, %p86
      %p88 = scmp.ne.s32.totalorder %s77, %s80
      %p89 = scmp.eq.s32.totalorder %s25, 2
      %p90 = por %p88, %p89
      %p91 = scmp.ne.s32.totalorder %s80, %s81
      %p92 = scmp.eq.s32.totalorder %s25, 0
      %p93 = por %p91, %p92
      %p94 = scmp.ne.s32.totalorder %s80, %s81
      %p95 = scmp.eq.s32.totalorder %s26, 2
      %p96 = por %p94, %p95
      %p98 = scmp.ne.s32.totalorder %s81, %s97
      %p99 = scmp.eq.s32.totalorder %s26, 0
      %p100 = por %p98, %p99
      %s101 = ssub.s32 %s20, %s27
      %p102 = scmp.eq.s32.totalorder %s101, 0
      %s104 = sadd.s32 %s103, 1
      %s105 = scalar_select %p102, %s103, %s104
      %p108 = pneg %p102
      %p109 = scmp.eq.s32.totalorder %s20, 2
      %p110 = por %p108, %p109
      %p111 = scmp.ne.s32.totalorder %s103, %s106
      %p112 = scmp.eq.s32.totalorder %s20, 0
      %p113 = por %p111, %p112
      %p114 = scmp.ne.s32.totalorder %s103, %s106
      %p115 = scmp.eq.s32.totalorder %s25, 2
      %p116 = por %p114, %p115
      %p117 = scmp.ne.s32.totalorder %s106, %s107
      %p118 = scmp.eq.s32.totalorder %s25, 0
      %p119 = por %p117, %p118
      %p120 = scmp.ne.s32.totalorder %s106, %s107
      %p121 = scmp.eq.s32.totalorder %s26, 2
      %p122 = por %p120, %p121
      %p124 = scmp.ne.s32.totalorder %s107, %s123
      %p125 = scmp.eq.s32.totalorder %s26, 0
      %p126 = por %p124, %p125
      %p127 = scmp.le.s32.totalorder 1, %s20
      %p128 = scmp.lt.s32.totalorder %s20, 4
      %p129 = pnand %p127, %p128
      %p130 = pneg %p129
      // Predicated region
      $region9: #{tpu_custom_call.1} parent=5 // pred_check
        _
      $region10: #{tpu_custom_call.1} parent=5 // pred_check_branch
        %132 = sbr.rel (%p129) target = $region12
      $region11: #{tpu_custom_call.1} parent=5 // pred_region
        %s133 = ssub.s32 %s20, 1
        // Predicated region
        $region13: #{tpu_custom_call.1} parent=11 // pred_check
          %p134 = pneg %p41
        $region14: #{tpu_custom_call.1} parent=11 // pred_check_branch
          %136 = sbr.rel (%p134) target = $region16
        $region15: #{tpu_custom_call.1} parent=11 // pred_region
          %s138 = ssub.s32 16, 16
          %139 = vsyncadd [#allocation5], %s138
          %142 = dma.hbm_to_smem %s0, 16, [#allocation2], [#allocation5]
        $region16: #{tpu_custom_call.1} parent=11 // pred_fallthru
          _
      $region12: #{tpu_custom_call.1} parent=5 // pred_fallthru
        _
      %p143 = scmp.lt.s32.totalorder %s20, 3
      // Predicated region
      $region17: #{tpu_custom_call.1} parent=5 // pred_check
        %p144 = pneg %p143
      $region18: #{tpu_custom_call.1} parent=5 // pred_check_branch
        %146 = sbr.rel (%p144) target = $region20
      $region19: #{tpu_custom_call.1} parent=5 // pred_region
        // Predicated region
        $region21: #{tpu_custom_call.1} parent=19 // pred_check
          %p147 = pneg %p61
        $region22: #{tpu_custom_call.1} parent=19 // pred_check_branch
          %149 = sbr.rel (%p147) target = $region24
        $region23: #{tpu_custom_call.1} parent=19 // pred_region
          %s150 = sand.u32 %s51, 1
          %s151 = scalar_lea.sflag [#allocation3], %s150
          %s152 = sand.u32 %s51, 1
          %s153 = smul.addr %s152, 8
          %s154 = scalar_lea.vmem [#allocation6], %s153
          %s156 = ssub.s32 128, 128
          %157 = vsyncadd %s151, %s156
          %s158 = smul.addr %s20, 128
          %s159 = scalar_lea.hbm %s1, %s158
          %s161 = sshll.u32 %s154, 4
          %s162 = int_to_ptr.vmem [resolvable:$true] %s161
          %164 = dma.hbm_to_vmem [thread:$0]  %s159, 128, %s162, %s151
        $region24: #{tpu_custom_call.1} parent=19 // pred_fallthru
          _
      $region20: #{tpu_custom_call.1} parent=5 // pred_fallthru
        _
      %p165 = scmp.le.s32.totalorder 1, %s20
      %p166 = scmp.lt.s32.totalorder %s20, 4
      %p167 = pnand %p165, %p166
      %p168 = pneg %p167
      // Predicated region
      $region25: #{tpu_custom_call.1} parent=5 // pred_check
        _
      $region26: #{tpu_custom_call.1} parent=5 // pred_check_branch
        %170 = sbr.rel (%p167) target = $region28
      $region27: #{tpu_custom_call.1} parent=5 // pred_region
        %s171 = ssub.s32 %s20, 1
        // Predicated region
        $region29: #{tpu_custom_call.1} parent=27 // pred_check
          %p172 = pneg %p41
        $region30: #{tpu_custom_call.1} parent=27 // pred_check_branch
          %174 = sbr.rel (%p172) target = $region32
        $region31: #{tpu_custom_call.1} parent=27 // pred_region
          %175 = dma.done [#allocation5], 16
        $region32: #{tpu_custom_call.1} parent=27 // pred_fallthru
          _
        %s176 = sand.u32 %s54, 1
        %s177 = scalar_lea.sflag [#allocation3], %s176
        %s178 = sand.u32 %s54, 1
        %s179 = smul.addr %s178, 8
        %s180 = scalar_lea.vmem [#allocation6], %s179
        // Predicated region
        $region33: #{tpu_custom_call.1} parent=27 // pred_check
          %p181 = pneg %p67
        $region34: #{tpu_custom_call.1} parent=27 // pred_check_branch
          %183 = sbr.rel (%p181) target = $region36
        $region35: #{tpu_custom_call.1} parent=27 // pred_region
          %184 = dma.done %s177, 128
        $region36: #{tpu_custom_call.1} parent=27 // pred_fallthru
          _
        %185 = sfence
        %p186 = pneg %p41
        %p187 = pneg %p38
        %s188 = sand.u32 %s54, 1
        %s189 = scalar_lea.sflag [#allocation3], %s188
        %s190 = sand.u32 %s54, 1
        %s191 = smul.addr %s190, 8
        %s192 = scalar_lea.vmem [#allocation6], %s191
        %p193 = pneg %p67
        %p194 = pneg %p64
        %p195 = pneg %p93
        %p196 = pneg %p90
        %s197 = sand.u32 %s80, 1
        %s198 = scalar_lea.sflag [#allocation4], %s197
        %s199 = sand.u32 %s80, 1
        %s200 = smul.addr %s199, 8
        %s201 = scalar_lea.vmem [#allocation7], %s200
        %p202 = pneg %p119
        %p203 = pneg %p116
        %s204 = sand.u32 %s106, 1
        %s205 = scalar_lea.sflag [#allocation9], %s204
        %s206 = sand.u32 %s106, 1
        %s207 = smul.addr %s206, 8
        %s208 = scalar_lea.vmem [#allocation8], %s207
        %v209 = vld [vmem:[%s180] sm:$0xff]
        %s210 = sld [smem:[#allocation2 + $0x1e]]
        %v211 = vstv %s210
        %v212 = vadd.f32 %v211, 0.0
        %s213 = sld [smem:[#allocation2]]
        %s214 = sld [smem:[#allocation2 + $0xa]]
        %s215 = sld [smem:[#allocation2 + $0x14]]
        %v216 = vstv %s213
        %v217 = vmul.f32 %v209, %v216
        %v218 = vstv %s214
        %v219 = vadd.f32 %v217, %v218
        %vm220 = vcmp.gt.f32.partialorder %v219, 20.0
        %v221 = vmin.f32 %v219, 20.0
        %v222 = vmul.f32 %v221, 1.442695
        %v223 = vpow.pop %v222
        %v224 = vadd.f32 %v223, 1.0
        %v225 = vlog2.pop %v224
        %v226 = vmul.f32 %v225, 0.6931472
        %v227 = vmul.f32 -0.5, %v223
        %v228 = vadd.f32 %v227, 1.0
        %v229 = vmul.f32 %v228, %v223
        %v230 = vand.u32 2147483647, %v223
        %vm231 = vcmp.lt.f32.partialorder %v230, 0.0004427343
        %v232 = vsel %vm231, %v229, %v226
        %v233 = vsel %vm220, %v219, %v232
        %v234 = vstv %s215
        %v235 = vmul.f32 %v233, %v234
        %v236 = vadd.f32 %v212, %v235
        %s237 = sld [smem:[#allocation2 + $0x1]]
        %s238 = sld [smem:[#allocation2 + $0xb]]
        %s239 = sld [smem:[#allocation2 + $0x15]]
        %v240 = vstv %s237
        %v241 = vmul.f32 %v209, %v240
        %v242 = vstv %s238
        %v243 = vadd.f32 %v241, %v242
        %vm244 = vcmp.gt.f32.partialorder %v243, 20.0
        %v245 = vmin.f32 %v243, 20.0
        %v246 = vmul.f32 %v245, 1.442695
        %v247 = vpow.pop %v246
        %v248 = vadd.f32 %v247, 1.0
        %v249 = vlog2.pop %v248
        %v250 = vmul.f32 %v249, 0.6931472
        %v251 = vmul.f32 -0.5, %v247
        %v252 = vadd.f32 %v251, 1.0
        %v253 = vmul.f32 %v252, %v247
        %v254 = vand.u32 2147483647, %v247
        %vm255 = vcmp.lt.f32.partialorder %v254, 0.0004427343
        %v256 = vsel %vm255, %v253, %v250
        %v257 = vsel %vm244, %v243, %v256
        %v258 = vstv %s239
        %v259 = vmul.f32 %v257, %v258
        %v260 = vadd.f32 %v236, %v259
        %s261 = sld [smem:[#allocation2 + $0x2]]
        %s262 = sld [smem:[#allocation2 + $0xc]]
        %s263 = sld [smem:[#allocation2 + $0x16]]
        %v264 = vstv %s261
        %v265 = vmul.f32 %v209, %v264
        %v266 = vstv %s262
        %v267 = vadd.f32 %v265, %v266
        %vm268 = vcmp.gt.f32.partialorder %v267, 20.0
        %v269 = vmin.f32 %v267, 20.0
        %v270 = vmul.f32 %v269, 1.442695
        %v271 = vpow.pop %v270
        %v272 = vadd.f32 %v271, 1.0
        %v273 = vlog2.pop %v272
        %v274 = vmul.f32 %v273, 0.6931472
        %v275 = vmul.f32 -0.5, %v271
        %v276 = vadd.f32 %v275, 1.0
        %v277 = vmul.f32 %v276, %v271
        %v278 = vand.u32 2147483647, %v271
        %vm279 = vcmp.lt.f32.partialorder %v278, 0.0004427343
        %v280 = vsel %vm279, %v277, %v274
        %v281 = vsel %vm268, %v267, %v280
        %v282 = vstv %s263
        %v283 = vmul.f32 %v281, %v282
        %v284 = vadd.f32 %v260, %v283
        %s285 = sld [smem:[#allocation2 + $0x3]]
        %s286 = sld [smem:[#allocation2 + $0xd]]
        %s287 = sld [smem:[#allocation2 + $0x17]]
        %v288 = vstv %s285
        %v289 = vmul.f32 %v209, %v288
        %v290 = vstv %s286
        %v291 = vadd.f32 %v289, %v290
        %vm292 = vcmp.gt.f32.partialorder %v291, 20.0
        %v293 = vmin.f32 %v291, 20.0
        %v294 = vmul.f32 %v293, 1.442695
        %v295 = vpow.pop %v294
        %v296 = vadd.f32 %v295, 1.0
        %v297 = vlog2.pop %v296
        %v298 = vmul.f32 %v297, 0.6931472
        %v299 = vmul.f32 -0.5, %v295
        %v300 = vadd.f32 %v299, 1.0
        %v301 = vmul.f32 %v300, %v295
        %v302 = vand.u32 2147483647, %v295
        %vm303 = vcmp.lt.f32.partialorder %v302, 0.0004427343
        %v304 = vsel %vm303, %v301, %v298
        %v305 = vsel %vm292, %v291, %v304
        %v306 = vstv %s287
        %v307 = vmul.f32 %v305, %v306
        %v308 = vadd.f32 %v284, %v307
        %s309 = sld [smem:[#allocation2 + $0x4]]
        %s310 = sld [smem:[#allocation2 + $0xe]]
        %s311 = sld [smem:[#allocation2 + $0x18]]
        %v312 = vstv %s309
        %v313 = vmul.f32 %v209, %v312
        %v314 = vstv %s310
        %v315 = vadd.f32 %v313, %v314
        %vm316 = vcmp.gt.f32.partialorder %v315, 20.0
        %v317 = vmin.f32 %v315, 20.0
        %v318 = vmul.f32 %v317, 1.442695
        %v319 = vpow.pop %v318
        %v320 = vadd.f32 %v319, 1.0
        %v321 = vlog2.pop %v320
        %v322 = vmul.f32 %v321, 0.6931472
        %v323 = vmul.f32 -0.5, %v319
        %v324 = vadd.f32 %v323, 1.0
        %v325 = vmul.f32 %v324, %v319
        %v326 = vand.u32 2147483647, %v319
        %vm327 = vcmp.lt.f32.partialorder %v326, 0.0004427343
        %v328 = vsel %vm327, %v325, %v322
        %v329 = vsel %vm316, %v315, %v328
        %v330 = vstv %s311
        %v331 = vmul.f32 %v329, %v330
        %v332 = vadd.f32 %v308, %v331
        %s333 = sld [smem:[#allocation2 + $0x5]]
        %s334 = sld [smem:[#allocation2 + $0xf]]
        %s335 = sld [smem:[#allocation2 + $0x19]]
        %v336 = vstv %s333
        %v337 = vmul.f32 %v209, %v336
        %v338 = vstv %s334
        %v339 = vadd.f32 %v337, %v338
        %vm340 = vcmp.gt.f32.partialorder %v339, 20.0
        %v341 = vmin.f32 %v339, 20.0
        %v342 = vmul.f32 %v341, 1.442695
        %v343 = vpow.pop %v342
        %v344 = vadd.f32 %v343, 1.0
        %v345 = vlog2.pop %v344
        %v346 = vmul.f32 %v345, 0.6931472
        %v347 = vmul.f32 -0.5, %v343
        %v348 = vadd.f32 %v347, 1.0
        %v349 = vmul.f32 %v348, %v343
        %v350 = vand.u32 2147483647, %v343
        %vm351 = vcmp.lt.f32.partialorder %v350, 0.0004427343
        %v352 = vsel %vm351, %v349, %v346
        %v353 = vsel %vm340, %v339, %v352
        %v354 = vstv %s335
        %v355 = vmul.f32 %v353, %v354
        %v356 = vadd.f32 %v332, %v355
        %s357 = sld [smem:[#allocation2 + $0x6]]
        %s358 = sld [smem:[#allocation2 + $0x10]]
        %s359 = sld [smem:[#allocation2 + $0x1a]]
        %v360 = vstv %s357
        %v361 = vmul.f32 %v209, %v360
        %v362 = vstv %s358
        %v363 = vadd.f32 %v361, %v362
        %vm364 = vcmp.gt.f32.partialorder %v363, 20.0
        %v365 = vmin.f32 %v363, 20.0
        %v366 = vmul.f32 %v365, 1.442695
        %v367 = vpow.pop %v366
        %v368 = vadd.f32 %v367, 1.0
        %v369 = vlog2.pop %v368
        %v370 = vmul.f32 %v369, 0.6931472
        %v371 = vmul.f32 -0.5, %v367
        %v372 = vadd.f32 %v371, 1.0
        %v373 = vmul.f32 %v372, %v367
        %v374 = vand.u32 2147483647, %v367
        %vm375 = vcmp.lt.f32.partialorder %v374, 0.0004427343
        %v376 = vsel %vm375, %v373, %v370
        %v377 = vsel %vm364, %v363, %v376
        %v378 = vstv %s359
        %v379 = vmul.f32 %v377, %v378
        %v380 = vadd.f32 %v356, %v379
        %s381 = sld [smem:[#allocation2 + $0x7]]
        %s382 = sld [smem:[#allocation2 + $0x11]]
        %s383 = sld [smem:[#allocation2 + $0x1b]]
        %v384 = vstv %s381
        %v385 = vmul.f32 %v209, %v384
        %v386 = vstv %s382
        %v387 = vadd.f32 %v385, %v386
        %vm388 = vcmp.gt.f32.partialorder %v387, 20.0
        %v389 = vmin.f32 %v387, 20.0
        %v390 = vmul.f32 %v389, 1.442695
        %v391 = vpow.pop %v390
        %v392 = vadd.f32 %v391, 1.0
        %v393 = vlog2.pop %v392
        %v394 = vmul.f32 %v393, 0.6931472
        %v395 = vmul.f32 -0.5, %v391
        %v396 = vadd.f32 %v395, 1.0
        %v397 = vmul.f32 %v396, %v391
        %v398 = vand.u32 2147483647, %v391
        %vm399 = vcmp.lt.f32.partialorder %v398, 0.0004427343
        %v400 = vsel %vm399, %v397, %v394
        %v401 = vsel %vm388, %v387, %v400
        %v402 = vstv %s383
        %v403 = vmul.f32 %v401, %v402
        %v404 = vadd.f32 %v380, %v403
        %s405 = sld [smem:[#allocation2 + $0x8]]
        %s406 = sld [smem:[#allocation2 + $0x12]]
        %s407 = sld [smem:[#allocation2 + $0x1c]]
        %v408 = vstv %s405
        %v409 = vmul.f32 %v209, %v408
        %v410 = vstv %s406
        %v411 = vadd.f32 %v409, %v410
        %vm412 = vcmp.gt.f32.partialorder %v411, 20.0
        %v413 = vmin.f32 %v411, 20.0
        %v414 = vmul.f32 %v413, 1.442695
        %v415 = vpow.pop %v414
        %v416 = vadd.f32 %v415, 1.0
        %v417 = vlog2.pop %v416
        %v418 = vmul.f32 %v417, 0.6931472
        %v419 = vmul.f32 -0.5, %v415
        %v420 = vadd.f32 %v419, 1.0
        %v421 = vmul.f32 %v420, %v415
        %v422 = vand.u32 2147483647, %v415
        %vm423 = vcmp.lt.f32.partialorder %v422, 0.0004427343
        %v424 = vsel %vm423, %v421, %v418
        %v425 = vsel %vm412, %v411, %v424
        %v426 = vstv %s407
        %v427 = vmul.f32 %v425, %v426
        %v428 = vadd.f32 %v404, %v427
        %s429 = sld [smem:[#allocation2 + $0x9]]
        %s430 = sld [smem:[#allocation2 + $0x13]]
        %s431 = sld [smem:[#allocation2 + $0x1d]]
        %v432 = vstv %s429
        %v433 = vmul.f32 %v209, %v432
        %v434 = vstv %s430
        %v435 = vadd.f32 %v433, %v434
        %vm436 = vcmp.gt.f32.partialorder %v435, 20.0
        %v437 = vmin.f32 %v435, 20.0
        %v438 = vmul.f32 %v437, 1.442695
        %v439 = vpow.pop %v438
        %v440 = vadd.f32 %v439, 1.0
        %v441 = vlog2.pop %v440
        %v442 = vmul.f32 %v441, 0.6931472
        %v443 = vmul.f32 -0.5, %v439
        %v444 = vadd.f32 %v443, 1.0
        %v445 = vmul.f32 %v444, %v439
        %v446 = vand.u32 2147483647, %v439
        %vm447 = vcmp.lt.f32.partialorder %v446, 0.0004427343
        %v448 = vsel %vm447, %v445, %v442
        %v449 = vsel %vm436, %v435, %v448
        %v450 = vstv %s431
        %v451 = vmul.f32 %v449, %v450
        %v452 = vadd.f32 %v428, %v451
        %453 = vst [vmem:[%s201] sm:$0xff] %v452
        %v454 = vmul.f32 %v209, %v209
        %v455 = vmul.f32 %v454, %v452
        %456 = vst [vmem:[%s208] sm:$0xff] %v455
        %s457 = sand.u32 %s80, 1
        %s458 = scalar_lea.sflag [#allocation4], %s457
        %s459 = sand.u32 %s80, 1
        %s460 = smul.addr %s459, 8
        %s461 = scalar_lea.vmem [#allocation7], %s460
        %s462 = sand.u32 %s106, 1
        %s463 = scalar_lea.sflag [#allocation9], %s462
        %s464 = sand.u32 %s106, 1
        %s465 = smul.addr %s464, 8
        %s466 = scalar_lea.vmem [#allocation8], %s465
        // Predicated region
        $region37: #{tpu_custom_call.1} parent=27 // pred_check
          %p467 = pneg %p90
        $region38: #{tpu_custom_call.1} parent=27 // pred_check_branch
          %469 = sbr.rel (%p467) target = $region40
        $region39: #{tpu_custom_call.1} parent=27 // pred_region
          %s471 = ssub.s32 128, 128
          %472 = vsyncadd %s458, %s471
          %s473 = smul.addr %s25, 128
          %s474 = scalar_lea.hbm %s2, %s473
          %s476 = sshll.u32 %s461, 4
          %s477 = int_to_ptr.vmem [resolvable:$true] %s476
          %479 = dma.vmem_to_hbm [thread:$0]  %s477, 128, %s474, %s458
        $region40: #{tpu_custom_call.1} parent=27 // pred_fallthru
          _
        // Predicated region
        $region41: #{tpu_custom_call.1} parent=27 // pred_check
          %p480 = pneg %p116
        $region42: #{tpu_custom_call.1} parent=27 // pred_check_branch
          %482 = sbr.rel (%p480) target = $region44
        $region43: #{tpu_custom_call.1} parent=27 // pred_region
          %s484 = ssub.s32 128, 128
          %485 = vsyncadd %s463, %s484
          %s486 = smul.addr %s25, 128
          %s487 = scalar_lea.hbm %s3, %s486
          %s489 = sshll.u32 %s466, 4
          %s490 = int_to_ptr.vmem [resolvable:$true] %s489
          %492 = dma.vmem_to_hbm [thread:$0]  %s490, 128, %s487, %s463
        $region44: #{tpu_custom_call.1} parent=27 // pred_fallthru
          _
      $region28: #{tpu_custom_call.1} parent=5 // pred_fallthru
        _
      %p493 = scmp.le.s32.totalorder 2, %s20
      // Predicated region
      $region45: #{tpu_custom_call.1} parent=5 // pred_check
        %p494 = pneg %p493
      $region46: #{tpu_custom_call.1} parent=5 // pred_check_branch
        %496 = sbr.rel (%p494) target = $region48
      $region47: #{tpu_custom_call.1} parent=5 // pred_region
        %s497 = ssub.s32 %s20, 2
        // Predicated region
        $region49: #{tpu_custom_call.1} parent=47 // pred_check
          %p498 = pneg %p96
        $region50: #{tpu_custom_call.1} parent=47 // pred_check_branch
          %500 = sbr.rel (%p498) target = $region52
        $region51: #{tpu_custom_call.1} parent=47 // pred_region
          %s501 = sand.u32 %s81, 1
          %s502 = scalar_lea.sflag [#allocation4], %s501
          %s503 = sand.u32 %s81, 1
          %s504 = smul.addr %s503, 8
          %s505 = scalar_lea.vmem [#allocation7], %s504
          %506 = dma.done %s502, 128
        $region52: #{tpu_custom_call.1} parent=47 // pred_fallthru
          _
        // Predicated region
        $region53: #{tpu_custom_call.1} parent=47 // pred_check
          %p507 = pneg %p122
        $region54: #{tpu_custom_call.1} parent=47 // pred_check_branch
          %509 = sbr.rel (%p507) target = $region56
        $region55: #{tpu_custom_call.1} parent=47 // pred_region
          %s510 = sand.u32 %s107, 1
          %s511 = scalar_lea.sflag [#allocation9], %s510
          %s512 = sand.u32 %s107, 1
          %s513 = smul.addr %s512, 8
          %s514 = scalar_lea.vmem [#allocation8], %s513
          %515 = dma.done %s511, 128
        $region56: #{tpu_custom_call.1} parent=47 // pred_fallthru
          _
      $region48: #{tpu_custom_call.1} parent=5 // pred_fallthru
        _
    $region6: #{tpu_custom_call.1} parent=1 // loop_footer
      %s24 = sadd.s32 1, %s20
    $region7: #{tpu_custom_call.1} parent=1 // loop_footer_branch
      %19 = sbr.rel target = $region3
    $region8: #{tpu_custom_call.1} parent=1 // loop_exit
      _
    %516 = vsyncpa [#allocation3], 1
    %s517 = scalar_lea.sflag [#allocation3], 1
    %518 = vsyncpa %s517, 1
    %519 = vsyncpa [#allocation4], 1
    %s520 = scalar_lea.sflag [#allocation4], 1
    %521 = vsyncpa %s520, 1
    %522 = vsyncpa [#allocation9], 1
    %s523 = scalar_lea.sflag [#allocation9], 1
    %524 = vsyncpa %s523, 1
    %525 = vsyncpa [#allocation5], 1
    %s526 = scalar_lea.sflag [#allocation5], 1
    %527 = vsyncpa %s526, 1

</llo_original>
